<compile_context>
chip_gen: v7x
topology: tpu7x:2x2x1
jax: 0.10.0
libtpu: 0.0.40
codegen_flags: <defaults>
</compile_context>

<pallas_src>
import functools

import jax
import jax.numpy as jnp
from jax.experimental import pallas as pl
from jax.experimental.pallas import tpu as pltpu


_NEG_INF = -1e30  # bias value for padded logit columns (exp underflows to 0 in f32)


def _round_up(x, m):
    return ((x + m - 1) // m) * m


def _mlp_logsoftmax_kernel(x_ref, w1_ref, b1_ref, w2_ref, b2_ref,
                           w3_ref, b3_ref, o_ref):
    compute_dtype = w1_ref.dtype

    # x arrives f32 from HBM; cast to the matmul dtype on the VPU (has slack).
    x = x_ref[...].astype(compute_dtype)

    # fc1 + ReLU  (dropout1 == identity in eval)
    h1 = jnp.dot(x, w1_ref[...], preferred_element_type=jnp.float32) + b1_ref[...]
    h1 = jnp.maximum(h1, 0.0)

    # fc2 + ReLU  (dropout2 == identity in eval)
    h2 = jnp.dot(h1.astype(compute_dtype), w2_ref[...],
                 preferred_element_type=jnp.float32) + b2_ref[...]
    h2 = jnp.maximum(h2, 0.0)

    # fc3 (padded output columns: zero weights + bias=-1e30 -> never win max, exp -> 0)
    logits = jnp.dot(h2.astype(compute_dtype), w3_ref[...],
                     preferred_element_type=jnp.float32) + b3_ref[...]

    # Numerically-stable LogSoftmax over the feature axis (dim=1), all f32.
    m = jnp.max(logits, axis=1, keepdims=True)
    shifted = logits - m
    lse = jnp.log(jnp.sum(jnp.exp(shifted), axis=1, keepdims=True))
    out = shifted - lse

    # Store only the real logit columns (static slice -> masked vst, 8x fewer bytes).
    o_ref[...] = out[:, :o_ref.shape[1]].astype(o_ref.dtype)


def prepare_params(w1, b1, w2, b2, w3, b3, compute_dtype=jnp.bfloat16):
    """One-time padding/casting of the static parameters.

    Weights stored (in_dim, out_dim) so the kernel computes y = x @ W + b
    (== PyTorch's x @ W_torch.T + b). Hidden/output dims are padded to 128
    lanes: zero weights/biases for hidden padding (dies at ReLU), bias=-1e30
    for padded output logits (invisible to log-softmax). Do NOT call per step.
    """
    E, H = w1.shape
    out_dim = w3.shape[1]
    H_pad = _round_up(H, 128)
    OUT_pad = _round_up(out_dim, 128)

    w1p = jnp.pad(w1, ((0, 0), (0, H_pad - H))).astype(compute_dtype)
    b1p = jnp.pad(b1, ((0, 0), (0, H_pad - H))).astype(jnp.float32)
    w2p = jnp.pad(w2, ((0, H_pad - H), (0, H_pad - H))).astype(compute_dtype)
    b2p = jnp.pad(b2, ((0, 0), (0, H_pad - H))).astype(jnp.float32)
    w3p = jnp.pad(w3, ((0, H_pad - H), (0, OUT_pad - out_dim))).astype(compute_dtype)
    b3p = jnp.pad(b3.astype(jnp.float32), ((0, 0), (0, OUT_pad - out_dim)),
                  constant_values=_NEG_INF)
    return w1p, b1p, w2p, b2p, w3p, b3p


@functools.partial(jax.jit,
                   static_argnames=("out_dim", "block_batch", "core_parallel"))
def distribution_predictor(x, w1p, b1p, w2p, b2p, w3p, b3p, *,
                           out_dim, block_batch=256, core_parallel=False):
    """x: (B, E) f32; padded params from prepare_params(). Returns (B, out_dim) f32.

    block_batch: batch tile rows. Use multiples of 256 on v6e/v7x, 128 on v5e,
    minimum 16 (bf16 sublane packing). core_parallel=True uses CORE_PARALLEL
    semantics to shard batch tiles across v7x's two TensorCores.
    """
    B, E = x.shape
    H_pad = w1p.shape[1]
    OUT_pad = w3p.shape[1]

    # Batch tiling: sublane-aligned, whole number of tiles. Only the batch dim of
    # x is padded (f32, no cast in the wrapper).
    TB = min(block_batch, _round_up(B, 8))
    B_pad = _round_up(B, TB)
    xp = x if B_pad == B else jnp.pad(x, ((0, B_pad - B), (0, 0)))

    grid = (B_pad // TB,)

    def resident(shape):
        # Constant index_map -> DMA'd once, VMEM-resident; Buffered(1) -> single
        # buffer (no pointless double-buffering of static weights).
        return pl.BlockSpec(shape, lambda i: (0, 0), pipeline_mode=pl.Buffered(1))

    in_specs = [
        pl.BlockSpec((TB, E), lambda i: (i, 0)),      # x: pipelined per batch tile
        resident(w1p.shape), resident(b1p.shape),
        resident(w2p.shape), resident(b2p.shape),
        resident(w3p.shape), resident(b3p.shape),
    ]
    out_specs = pl.BlockSpec((TB, out_dim), lambda i: (i, 0))

    # VMEM budget: double-buffered x/out tiles + single-buffered weights +
    # f32/bf16 intermediates (h1, h2, logits), with generous margin.
    weight_bytes = sum(int(a.size) * a.dtype.itemsize
                       for a in (w1p, b1p, w2p, b2p, w3p, b3p))
    tile_bytes = 2 * TB * E * 4 + 2 * TB * out_dim * 4
    interm_bytes = 6 * TB * H_pad * 4 + 2 * TB * OUT_pad * 4
    vmem_limit = weight_bytes + tile_bytes + interm_bytes + (4 << 20)
    vmem_limit = int(max(16 << 20, min(vmem_limit, 48 << 20)))

    flops = 2 * B_pad * (E * H_pad + H_pad * H_pad + H_pad * OUT_pad)
    bytes_accessed = (B_pad * E * 4) + weight_bytes + (B_pad * out_dim * 4)
    cost = pl.CostEstimate(flops=flops,
                           transcendentals=B_pad * (OUT_pad + 1),
                           bytes_accessed=bytes_accessed)

    dim_sem = (pltpu.CORE_PARALLEL,) if core_parallel else ("parallel",)

    out = pl.pallas_call(
        _mlp_logsoftmax_kernel,
        out_shape=jax.ShapeDtypeStruct((B_pad, out_dim), jnp.float32),
        grid=grid,
        in_specs=in_specs,
        out_specs=out_specs,
        compiler_params=pltpu.CompilerParams(
            dimension_semantics=dim_sem,
            vmem_limit_bytes=vmem_limit),
        cost_estimate=cost,
    )(xp, w1p, b1p, w2p, b2p, w3p, b3p)

    if B_pad != B:
        out = out[:B]
    return out


def init_params(key, embedding_dim, hidden_dim, output_dim):
    """Deterministic init mirroring nn.Linear shapes (stored transposed: (in, out))."""
    k1, k2, k3, k4, k5, k6 = jax.random.split(key, 6)

    def linear(kw, kb, fan_in, fan_out):
        bound = 1.0 / jnp.sqrt(fan_in)
        w = jax.random.uniform(kw, (fan_in, fan_out), jnp.float32, -bound, bound)
        b = jax.random.uniform(kb, (1, fan_out), jnp.float32, -bound, bound)
        return w, b

    w1, b1 = linear(k1, k2, embedding_dim, hidden_dim)
    w2, b2 = linear(k3, k4, hidden_dim, hidden_dim)
    w3, b3 = linear(k5, k6, hidden_dim, output_dim)
    return w1, b1, w2, b2, w3, b3


if __name__ == "__main__":
    # Small shapes consistent with the module (hidden_dim matches module default).
    batch = 32
    embedding_dim = 32
    hidden_dim = 256
    output_dim = 16

    key = jax.random.PRNGKey(0)
    kx, kp = jax.random.split(key)
    x = jax.random.normal(kx, (batch, embedding_dim), jnp.float32)
    params = init_params(kp, embedding_dim, hidden_dim, output_dim)

    # One-time param padding/casting (static), then the per-call kernel.
    padded = prepare_params(*params)

    # block_batch=16 so the 1-D batch grid has >1 step at this toy size
    # (production default is 256; minimum 16 for bf16 sublane packing).
    out = distribution_predictor(x, *padded, out_dim=output_dim, block_batch=16)
    jax.block_until_ready(out)
    assert out.shape == (batch, output_dim)

    # Reference: same forward pass in plain JAX, matching the kernel's bf16
    # matmul inputs with f32 accumulation and an f32 epilogue.
    w1, b1, w2, b2, w3, b3 = params
    bf16 = jnp.bfloat16
    h1 = jnp.maximum(jnp.dot(x.astype(bf16), w1.astype(bf16),
                             preferred_element_type=jnp.float32) + b1, 0.0)
    h2 = jnp.maximum(jnp.dot(h1.astype(bf16), w2.astype(bf16),
                             preferred_element_type=jnp.float32) + b2, 0.0)
    logits = jnp.dot(h2.astype(bf16), w3.astype(bf16),
                     preferred_element_type=jnp.float32) + b3
    ref = jax.nn.log_softmax(logits, axis=1)

    max_err = jnp.max(jnp.abs(out - ref))
    assert jnp.allclose(out, ref, atol=2e-2, rtol=2e-2), f"max abs err {max_err}"
    # Valid log-probabilities: rows sum to 1 in probability space.
    assert jnp.allclose(jnp.sum(jnp.exp(out), axis=1), 1.0, atol=1e-3)

    print("KERNEL_OK")
</pallas_src>

<mosaic_0001>
module attributes {stable_mosaic.version = 11 : i64} {
  func.func @_mlp_logsoftmax_kernel(%arg0: i32, %arg1: memref<16x32xf32, #tpu.memory_space<vmem>>, %arg2: memref<32x256xbf16, #tpu.memory_space<vmem>>, %arg3: memref<1x256xf32, #tpu.memory_space<vmem>>, %arg4: memref<256x256xbf16, #tpu.memory_space<vmem>>, %arg5: memref<1x256xf32, #tpu.memory_space<vmem>>, %arg6: memref<256x128xbf16, #tpu.memory_space<vmem>>, %arg7: memref<1x128xf32, #tpu.memory_space<vmem>>, %arg8: memref<16x16xf32, #tpu.memory_space<vmem>>) attributes {dimension_semantics = [#tpu.dimension_semantics<parallel>], iteration_bounds = array<i64: 2>, scalar_prefetch = 0 : i64, scratch_operands = 0 : i64, tpu.core_type = #tpu.core_type<tc>, window_params = [{transform_indices = @transform_0, window_bounds = array<i64: 16, 32>}, {pipeline_mode = #tpu.pipeline_mode<synchronous>, transform_indices = @transform_1, window_bounds = array<i64: 32, 256>}, {pipeline_mode = #tpu.pipeline_mode<synchronous>, transform_indices = @transform_2, window_bounds = array<i64: 1, 256>}, {pipeline_mode = #tpu.pipeline_mode<synchronous>, transform_indices = @transform_3, window_bounds = array<i64: 256, 256>}, {pipeline_mode = #tpu.pipeline_mode<synchronous>, transform_indices = @transform_4, window_bounds = array<i64: 1, 256>}, {pipeline_mode = #tpu.pipeline_mode<synchronous>, transform_indices = @transform_5, window_bounds = array<i64: 256, 128>}, {pipeline_mode = #tpu.pipeline_mode<synchronous>, transform_indices = @transform_6, window_bounds = array<i64: 1, 128>}, {transform_indices = @transform_7, window_bounds = array<i64: 16, 16>}]} {
    %c0 = arith.constant 0 : index
    %c0_0 = arith.constant 0 : index
    %0 = vector.load %arg1[%c0, %c0_0] : memref<16x32xf32, #tpu.memory_space<vmem>>, vector<16x32xf32>
    %1 = arith.truncf %0 : vector<16x32xf32> to vector<16x32xbf16>
    %c0_1 = arith.constant 0 : index
    %c0_2 = arith.constant 0 : index
    %2 = vector.load %arg2[%c0_1, %c0_2] : memref<32x256xbf16, #tpu.memory_space<vmem>>, vector<32x256xbf16>
    %cst = arith.constant dense<0.000000e+00> : vector<16x256xf32>
    %3 = tpu.matmul %1, %2, %cst {dimension_numbers = #tpu.dot_dimension_numbers<[1], [0], [0], [1], [0, 0, 1, 1], [], []>} : vector<16x32xbf16>, vector<32x256xbf16>, vector<16x256xf32> -> vector<16x256xf32>
    %c0_3 = arith.constant 0 : index
    %c0_4 = arith.constant 0 : index
    %4 = vector.load %arg3[%c0_3, %c0_4] : memref<1x256xf32, #tpu.memory_space<vmem>>, vector<1x256xf32>
    %5 = vector.broadcast %4 : vector<1x256xf32> to vector<16x256xf32>
    %6 = arith.addf %3, %5 : vector<16x256xf32>
    %cst_5 = arith.constant 0.000000e+00 : f32
    %7 = vector.broadcast %cst_5 : f32 to vector<16x256xf32>
    %8 = arith.maximumf %6, %7 : vector<16x256xf32>
    %9 = arith.truncf %8 : vector<16x256xf32> to vector<16x256xbf16>
    %c0_6 = arith.constant 0 : index
    %c0_7 = arith.constant 0 : index
    %10 = vector.load %arg4[%c0_6, %c0_7] : memref<256x256xbf16, #tpu.memory_space<vmem>>, vector<256x256xbf16>
    %cst_8 = arith.constant dense<0.000000e+00> : vector<16x256xf32>
    %11 = tpu.matmul %9, %10, %cst_8 {dimension_numbers = #tpu.dot_dimension_numbers<[1], [0], [0], [1], [0, 0, 1, 1], [], []>} : vector<16x256xbf16>, vector<256x256xbf16>, vector<16x256xf32> -> vector<16x256xf32>
    %c0_9 = arith.constant 0 : index
    %c0_10 = arith.constant 0 : index
    %12 = vector.load %arg5[%c0_9, %c0_10] : memref<1x256xf32, #tpu.memory_space<vmem>>, vector<1x256xf32>
    %13 = vector.broadcast %12 : vector<1x256xf32> to vector<16x256xf32>
    %14 = arith.addf %11, %13 : vector<16x256xf32>
    %cst_11 = arith.constant 0.000000e+00 : f32
    %15 = vector.broadcast %cst_11 : f32 to vector<16x256xf32>
    %16 = arith.maximumf %14, %15 : vector<16x256xf32>
    %17 = arith.truncf %16 : vector<16x256xf32> to vector<16x256xbf16>
    %c0_12 = arith.constant 0 : index
    %c0_13 = arith.constant 0 : index
    %18 = vector.load %arg6[%c0_12, %c0_13] : memref<256x128xbf16, #tpu.memory_space<vmem>>, vector<256x128xbf16>
    %cst_14 = arith.constant dense<0.000000e+00> : vector<16x128xf32>
    %19 = tpu.matmul %17, %18, %cst_14 {dimension_numbers = #tpu.dot_dimension_numbers<[1], [0], [0], [1], [0, 0, 1, 1], [], []>} : vector<16x256xbf16>, vector<256x128xbf16>, vector<16x128xf32> -> vector<16x128xf32>
    %c0_15 = arith.constant 0 : index
    %c0_16 = arith.constant 0 : index
    %20 = vector.load %arg7[%c0_15, %c0_16] : memref<1x128xf32, #tpu.memory_space<vmem>>, vector<1x128xf32>
    %21 = vector.broadcast %20 : vector<1x128xf32> to vector<16x128xf32>
    %22 = arith.addf %19, %21 : vector<16x128xf32>
    %cst_17 = arith.constant dense<0xFF800000> : vector<16xf32>
    %23 = vector.multi_reduction <maximumf>, %22, %cst_17 [1] : vector<16x128xf32> to vector<16xf32>
    %24 = vector.shape_cast %23 : vector<16xf32> to vector<16x1xf32>
    %25 = vector.broadcast %24 : vector<16x1xf32> to vector<16x128xf32>
    %26 = arith.subf %22, %25 : vector<16x128xf32>
    %27 = math.exp %26 : vector<16x128xf32>
    %cst_18 = arith.constant dense<0.000000e+00> : vector<16xf32>
    %28 = vector.multi_reduction <add>, %27, %cst_18 [1] : vector<16x128xf32> to vector<16xf32>
    %29 = vector.shape_cast %28 : vector<16xf32> to vector<16x1xf32>
    %30 = math.log %29 : vector<16x1xf32>
    %31 = vector.broadcast %30 : vector<16x1xf32> to vector<16x128xf32>
    %32 = arith.subf %26, %31 : vector<16x128xf32>
    %33 = vector.extract_strided_slice %32 {offsets = [0, 0], sizes = [16, 16], strides = [1, 1]} : vector<16x128xf32> to vector<16x16xf32>
    %c0_19 = arith.constant 0 : index
    %c0_20 = arith.constant 0 : index
    %34 = vector.load %arg8[%c0_19, %c0_20] : memref<16x16xf32, #tpu.memory_space<vmem>>, vector<16x16xf32>
    tpu.vector_store %arg8[%c0_19, %c0_20], %33 {strides = array<i32>} : memref<16x16xf32, #tpu.memory_space<vmem>>, vector<16x16xf32>,
    return
  }
  func.func @transform_0(%arg0: i32) -> (i32, i32) {
    %c0_i32 = arith.constant 0 : i32
    %c0_i32_0 = arith.constant 0 : i32
    return %arg0, %c0_i32 : i32, i32
  }
  func.func @transform_1(%arg0: i32) -> (i32, i32) {
    %c0_i32 = arith.constant 0 : i32
    %c0_i32_0 = arith.constant 0 : i32
    %c0_i32_1 = arith.constant 0 : i32
    return %c0_i32, %c0_i32_0 : i32, i32
  }
  func.func @transform_2(%arg0: i32) -> (i32, i32) {
    %c0_i32 = arith.constant 0 : i32
    %c0_i32_0 = arith.constant 0 : i32
    %c0_i32_1 = arith.constant 0 : i32
    return %c0_i32, %c0_i32_0 : i32, i32
  }
  func.func @transform_3(%arg0: i32) -> (i32, i32) {
    %c0_i32 = arith.constant 0 : i32
    %c0_i32_0 = arith.constant 0 : i32
    %c0_i32_1 = arith.constant 0 : i32
    return %c0_i32, %c0_i32_0 : i32, i32
  }
  func.func @transform_4(%arg0: i32) -> (i32, i32) {
    %c0_i32 = arith.constant 0 : i32
    %c0_i32_0 = arith.constant 0 : i32
    %c0_i32_1 = arith.constant 0 : i32
    return %c0_i32, %c0_i32_0 : i32, i32
  }
  func.func @transform_5(%arg0: i32) -> (i32, i32) {
    %c0_i32 = arith.constant 0 : i32
    %c0_i32_0 = arith.constant 0 : i32
    %c0_i32_1 = arith.constant 0 : i32
    return %c0_i32, %c0_i32_0 : i32, i32
  }
  func.func @transform_6(%arg0: i32) -> (i32, i32) {
    %c0_i32 = arith.constant 0 : i32
    %c0_i32_0 = arith.constant 0 : i32
    %c0_i32_1 = arith.constant 0 : i32
    return %c0_i32, %c0_i32_0 : i32, i32
  }
  func.func @transform_7(%arg0: i32) -> (i32, i32) {
    %c0_i32 = arith.constant 0 : i32
    %c0_i32_0 = arith.constant 0 : i32
    return %arg0, %c0_i32 : i32, i32
  }
}

</mosaic_0001>

<llo_original>
// kernel: distribution_predictor.1
$region0: #{distribution_predictor.1}
  #allocation0 [shape = 'u32[]', space=smem, size = 0x4, offset = 0x4, fixed_abs, tag = 'smem constant byte address 0x4 - core index']
  #allocation1 [shape = 'u32[144,128]{1,0:T(1,128)}', space=vmem, size = 0x12000, scoped, tag = 'internal scratch']
  %s0 = inlined_call_operand.hbm [shape: f32[32,32], index: 0, kind: input, shape index: {}]
  %s1 = inlined_call_operand.hbm [shape: bf16[32,256], index: 1, kind: input, shape index: {}]
  %s2 = inlined_call_operand.vmem [shape: f32[1,256], index: 2, kind: input, shape index: {}]
  %s3 = inlined_call_operand.hbm [shape: bf16[256,256], index: 3, kind: input, shape index: {}]
  %s4 = inlined_call_operand.vmem [shape: f32[1,256], index: 4, kind: input, shape index: {}]
  %s5 = inlined_call_operand.hbm [shape: bf16[256,128], index: 5, kind: input, shape index: {}]
  %s6 = inlined_call_operand.vmem [shape: f32[1,128], index: 6, kind: input, shape index: {}]
  %s7 = inlined_call_operand.vmem [shape: f32[32,16], index: 7, kind: output, shape index: {}]
  %s8 = sld [smem:[#allocation0]]
  $region77: #{distribution_predictor.1} parent=0
    _
  %s10 = ssub.s32 1, %s8
  %s11 = scalar_select 0, %s10, %s8
  $region1: #{distribution_predictor.1} parent=0
    #allocation2 [shape = 'u8[16384]{0}', space=vmem, size = 0x4000, scoped, tag = 'input window, operand 0']
    #allocation3 [shape = 's32[2]{0}', space=sflag, size = 0x8, scoped, tag = 'scoped memory for distribution_predictor.1']
    #allocation4 [shape = 'u8[16384]{0}', space=vmem, size = 0x4000, scoped, tag = 'input window, operand 1, single buffered']
    #allocation5 [shape = 's32[1]{0}', space=sflag, size = 0x4, scoped, tag = 'scoped memory for distribution_predictor.1']
    #allocation6 [shape = 'u8[131072]{0}', space=vmem, size = 0x20000, scoped, tag = 'input window, operand 3, single buffered']
    #allocation7 [shape = 'u8[65536]{0}', space=vmem, size = 0x10000, scoped, tag = 'input window, operand 5, single buffered']
    #allocation8 [shape = 's32[1]{0}', space=sflag, size = 0x4, scoped, tag = 'scoped memory for distribution_predictor.1']
    %12 = vsyncpa [#allocation3], 0
    %s13 = scalar_lea.sflag [#allocation3], 1
    %14 = vsyncpa %s13, 0
    %15 = vsyncpa [#allocation5], 0
    %16 = vsyncpa [#allocation8], 0
    loop: start=0, step=1, limit=4
    $region2: #{distribution_predictor.1} parent=1 // loop_pre_header
      _
    $region3: #{distribution_predictor.1} parent=1 // loop_header
      %s18 = sphi 0, %s22
      %p19 = scmp.ge.s32.totalorder %s18, 4
      %s28 = sphi 0, %s30
      %s31 = sphi 0, %s28
      %s32 = sphi 0, %s31
      %s48 = sphi 0, %s32
      %s52 = sphi 0, %s52
      %s54 = sphi 0, %s52
      %s55 = sphi 0, %s54
      %s69 = sphi 0, %s55
      %s73 = sphi 0, %s73
      %s75 = sphi 0, %s73
      %s76 = sphi 0, %s75
      %s90 = sphi 0, %s76
      %s94 = sphi 0, %s94
      %s96 = sphi 0, %s94
      %s97 = sphi 0, %s96
      %s111 = sphi 0, %s97
      %s115 = sphi 0, %s115
      %s117 = sphi 0, %s115
      %s118 = sphi 0, %s117
      %s132 = sphi 0, %s118
      %s136 = sphi 0, %s136
      %s138 = sphi 0, %s136
      %s139 = sphi 0, %s138
      %s153 = sphi 0, %s139
      %s157 = sphi 0, %s157
      %s159 = sphi 0, %s157
      %s160 = sphi 0, %s159
      %s174 = sphi 0, %s160
      %s180 = sphi 0, %s182
      %s183 = sphi 0, %s180
      %s184 = sphi 0, %s183
      %s200 = sphi 0, %s184
    $region4: #{distribution_predictor.1} parent=1 // loop_header_branch
      %21 = sbr.rel (%p19) target = $region8
    $region5: #{distribution_predictor.1} parent=1 // loop_body
      %s23 = ssub.s32 %s18, 1
      %s24 = ssub.s32 %s18, 2
      %s25 = sadd.s32 %s18, 1
      %s26 = ssub.s32 %s18, %s25
      %p27 = scmp.eq.s32.totalorder %s26, 0
      %s29 = sadd.s32 %s28, 1
      %s30 = scalar_select %p27, %s28, %s29
      %p33 = pneg %p27
      %p34 = scmp.eq.s32.totalorder %s18, 1
      %p35 = por %p33, %p34
      %p36 = scmp.ne.s32.totalorder %s28, %s31
      %p37 = scmp.eq.s32.totalorder %s18, 0
      %p38 = por %p36, %p37
      %p39 = scmp.ne.s32.totalorder %s28, %s31
      %p40 = scmp.eq.s32.totalorder %s23, 1
      %p41 = por %p39, %p40
      %p42 = scmp.ne.s32.totalorder %s31, %s32
      %p43 = scmp.eq.s32.totalorder %s23, 0
      %p44 = por %p42, %p43
      %p45 = scmp.ne.s32.totalorder %s31, %s32
      %p46 = scmp.eq.s32.totalorder %s24, 1
      %p47 = por %p45, %p46
      %p49 = scmp.ne.s32.totalorder %s32, %s48
      %p50 = scmp.eq.s32.totalorder %s24, 0
      %p51 = por %p49, %p50
      %s53 = sadd.s32 %s52, 1
      %p56 = scmp.eq.s32.totalorder %s18, 1
      %p57 = scmp.ne.s32.totalorder %s52, %s54
      %p58 = scmp.eq.s32.totalorder %s18, 0
      %p59 = por %p57, %p58
      %p60 = scmp.ne.s32.totalorder %s52, %s54
      %p61 = scmp.eq.s32.totalorder %s23, 1
      %p62 = por %p60, %p61
      %p63 = scmp.ne.s32.totalorder %s54, %s55
      %p64 = scmp.eq.s32.totalorder %s23, 0
      %p65 = por %p63, %p64
      %p66 = scmp.ne.s32.totalorder %s54, %s55
      %p67 = scmp.eq.s32.totalorder %s24, 1
      %p68 = por %p66, %p67
      %p70 = scmp.ne.s32.totalorder %s55, %s69
      %p71 = scmp.eq.s32.totalorder %s24, 0
      %p72 = por %p70, %p71
      %s74 = sadd.s32 %s73, 1
      %p77 = scmp.eq.s32.totalorder %s18, 1
      %p78 = scmp.ne.s32.totalorder %s73, %s75
      %p79 = scmp.eq.s32.totalorder %s18, 0
      %p80 = por %p78, %p79
      %p81 = scmp.ne.s32.totalorder %s73, %s75
      %p82 = scmp.eq.s32.totalorder %s23, 1
      %p83 = por %p81, %p82
      %p84 = scmp.ne.s32.totalorder %s75, %s76
      %p85 = scmp.eq.s32.totalorder %s23, 0
      %p86 = por %p84, %p85
      %p87 = scmp.ne.s32.totalorder %s75, %s76
      %p88 = scmp.eq.s32.totalorder %s24, 1
      %p89 = por %p87, %p88
      %p91 = scmp.ne.s32.totalorder %s76, %s90
      %p92 = scmp.eq.s32.totalorder %s24, 0
      %p93 = por %p91, %p92
      %s95 = sadd.s32 %s94, 1
      %p98 = scmp.eq.s32.totalorder %s18, 1
      %p99 = scmp.ne.s32.totalorder %s94, %s96
      %p100 = scmp.eq.s32.totalorder %s18, 0
      %p101 = por %p99, %p100
      %p102 = scmp.ne.s32.totalorder %s94, %s96
      %p103 = scmp.eq.s32.totalorder %s23, 1
      %p104 = por %p102, %p103
      %p105 = scmp.ne.s32.totalorder %s96, %s97
      %p106 = scmp.eq.s32.totalorder %s23, 0
      %p107 = por %p105, %p106
      %p108 = scmp.ne.s32.totalorder %s96, %s97
      %p109 = scmp.eq.s32.totalorder %s24, 1
      %p110 = por %p108, %p109
      %p112 = scmp.ne.s32.totalorder %s97, %s111
      %p113 = scmp.eq.s32.totalorder %s24, 0
      %p114 = por %p112, %p113
      %s116 = sadd.s32 %s115, 1
      %p119 = scmp.eq.s32.totalorder %s18, 1
      %p120 = scmp.ne.s32.totalorder %s115, %s117
      %p121 = scmp.eq.s32.totalorder %s18, 0
      %p122 = por %p120, %p121
      %p123 = scmp.ne.s32.totalorder %s115, %s117
      %p124 = scmp.eq.s32.totalorder %s23, 1
      %p125 = por %p123, %p124
      %p126 = scmp.ne.s32.totalorder %s117, %s118
      %p127 = scmp.eq.s32.totalorder %s23, 0
      %p128 = por %p126, %p127
      %p129 = scmp.ne.s32.totalorder %s117, %s118
      %p130 = scmp.eq.s32.totalorder %s24, 1
      %p131 = por %p129, %p130
      %p133 = scmp.ne.s32.totalorder %s118, %s132
      %p134 = scmp.eq.s32.totalorder %s24, 0
      %p135 = por %p133, %p134
      %s137 = sadd.s32 %s136, 1
      %p140 = scmp.eq.s32.totalorder %s18, 1
      %p141 = scmp.ne.s32.totalorder %s136, %s138
      %p142 = scmp.eq.s32.totalorder %s18, 0
      %p143 = por %p141, %p142
      %p144 = scmp.ne.s32.totalorder %s136, %s138
      %p145 = scmp.eq.s32.totalorder %s23, 1
      %p146 = por %p144, %p145
      %p147 = scmp.ne.s32.totalorder %s138, %s139
      %p148 = scmp.eq.s32.totalorder %s23, 0
      %p149 = por %p147, %p148
      %p150 = scmp.ne.s32.totalorder %s138, %s139
      %p151 = scmp.eq.s32.totalorder %s24, 1
      %p152 = por %p150, %p151
      %p154 = scmp.ne.s32.totalorder %s139, %s153
      %p155 = scmp.eq.s32.totalorder %s24, 0
      %p156 = por %p154, %p155
      %s158 = sadd.s32 %s157, 1
      %p161 = scmp.eq.s32.totalorder %s18, 1
      %p162 = scmp.ne.s32.totalorder %s157, %s159
      %p163 = scmp.eq.s32.totalorder %s18, 0
      %p164 = por %p162, %p163
      %p165 = scmp.ne.s32.totalorder %s157, %s159
      %p166 = scmp.eq.s32.totalorder %s23, 1
      %p167 = por %p165, %p166
      %p168 = scmp.ne.s32.totalorder %s159, %s160
      %p169 = scmp.eq.s32.totalorder %s23, 0
      %p170 = por %p168, %p169
      %p171 = scmp.ne.s32.totalorder %s159, %s160
      %p172 = scmp.eq.s32.totalorder %s24, 1
      %p173 = por %p171, %p172
      %p175 = scmp.ne.s32.totalorder %s160, %s174
      %p176 = scmp.eq.s32.totalorder %s24, 0
      %p177 = por %p175, %p176
      %s178 = ssub.s32 %s18, %s25
      %p179 = scmp.eq.s32.totalorder %s178, 0
      %s181 = sadd.s32 %s180, 1
      %s182 = scalar_select %p179, %s180, %s181
      %p185 = pneg %p179
      %p186 = scmp.eq.s32.totalorder %s18, 1
      %p187 = por %p185, %p186
      %p188 = scmp.ne.s32.totalorder %s180, %s183
      %p189 = scmp.eq.s32.totalorder %s18, 0
      %p190 = por %p188, %p189
      %p191 = scmp.ne.s32.totalorder %s180, %s183
      %p192 = scmp.eq.s32.totalorder %s23, 1
      %p193 = por %p191, %p192
      %p194 = scmp.ne.s32.totalorder %s183, %s184
      %p195 = scmp.eq.s32.totalorder %s23, 0
      %p196 = por %p194, %p195
      %p197 = scmp.ne.s32.totalorder %s183, %s184
      %p198 = scmp.eq.s32.totalorder %s24, 1
      %p199 = por %p197, %p198
      %p201 = scmp.ne.s32.totalorder %s184, %s200
      %p202 = scmp.eq.s32.totalorder %s24, 0
      %p203 = por %p201, %p202
      %p204 = scmp.le.s32.totalorder 1, %s18
      %p205 = scmp.lt.s32.totalorder %s18, 3
      %p206 = pnand %p204, %p205
      %p207 = pneg %p206
      // Predicated region
      $region9: #{distribution_predictor.1} parent=5 // pred_check
        _
      $region10: #{distribution_predictor.1} parent=5 // pred_check_branch
        %209 = sbr.rel (%p206) target = $region12
      $region11: #{distribution_predictor.1} parent=5 // pred_region
        %s210 = ssub.s32 %s18, 1
        // Predicated region
        $region13: #{distribution_predictor.1} parent=11 // pred_check
          %p211 = pneg %p65
        $region14: #{distribution_predictor.1} parent=11 // pred_check_branch
          %213 = sbr.rel (%p211) target = $region16
        $region15: #{distribution_predictor.1} parent=11 // pred_region
          %s215 = ssub.s32 512, 512
          %216 = vsyncadd [#allocation5], %s215
          %s217 = sshll.u32 [#allocation4], 4
          %s218 = int_to_ptr.vmem [resolvable:$true] %s217
          %223 = dma.hbm_to_vmem [thread:$0]  %s1, 512, %s218, [#allocation5], 128, 128, 8
        $region16: #{distribution_predictor.1} parent=11 // pred_fallthru
          _
        // Predicated region
        $region17: #{distribution_predictor.1} parent=11 // pred_check
          %p224 = pneg %p86
        $region18: #{distribution_predictor.1} parent=11 // pred_check_branch
          %226 = sbr.rel (%p224) target = $region20
        $region19: #{distribution_predictor.1} parent=11 // pred_region
          _
        $region20: #{distribution_predictor.1} parent=11 // pred_fallthru
          _
        // Predicated region
        $region21: #{distribution_predictor.1} parent=11 // pred_check
          %p227 = pneg %p107
        $region22: #{distribution_predictor.1} parent=11 // pred_check_branch
          %229 = sbr.rel (%p227) target = $region24
        $region23: #{distribution_predictor.1} parent=11 // pred_region
          %s231 = ssub.s32 4096, 4096
          %232 = vsyncadd [#allocation5], %s231
          %s233 = sshll.u32 [#allocation6], 4
          %s234 = int_to_ptr.vmem [resolvable:$true] %s233
          %239 = dma.hbm_to_vmem [thread:$0]  %s3, 4096, %s234, [#allocation5], 128, 128, 8
        $region24: #{distribution_predictor.1} parent=11 // pred_fallthru
          _
        // Predicated region
        $region25: #{distribution_predictor.1} parent=11 // pred_check
          %p240 = pneg %p128
        $region26: #{distribution_predictor.1} parent=11 // pred_check_branch
          %242 = sbr.rel (%p240) target = $region28
        $region27: #{distribution_predictor.1} parent=11 // pred_region
          _
        $region28: #{distribution_predictor.1} parent=11 // pred_fallthru
          _
        // Predicated region
        $region29: #{distribution_predictor.1} parent=11 // pred_check
          %p243 = pneg %p149
        $region30: #{distribution_predictor.1} parent=11 // pred_check_branch
          %245 = sbr.rel (%p243) target = $region32
        $region31: #{distribution_predictor.1} parent=11 // pred_region
          %s247 = ssub.s32 2048, 2048
          %248 = vsyncadd [#allocation8], %s247
          %s249 = sshll.u32 [#allocation7], 4
          %s250 = int_to_ptr.vmem [resolvable:$true] %s249
          %255 = dma.hbm_to_vmem [thread:$0]  %s5, 2048, %s250, [#allocation8], 64, 64, 4
        $region32: #{distribution_predictor.1} parent=11 // pred_fallthru
          _
        // Predicated region
        $region33: #{distribution_predictor.1} parent=11 // pred_check
          %p256 = pneg %p170
        $region34: #{distribution_predictor.1} parent=11 // pred_check_branch
          %258 = sbr.rel (%p256) target = $region36
        $region35: #{distribution_predictor.1} parent=11 // pred_region
          _
        $region36: #{distribution_predictor.1} parent=11 // pred_fallthru
          _
      $region12: #{distribution_predictor.1} parent=5 // pred_fallthru
        _
      %p259 = scmp.lt.s32.totalorder %s18, 2
      // Predicated region
      $region37: #{distribution_predictor.1} parent=5 // pred_check
        %p260 = pneg %p259
      $region38: #{distribution_predictor.1} parent=5 // pred_check_branch
        %262 = sbr.rel (%p260) target = $region40
      $region39: #{distribution_predictor.1} parent=5 // pred_region
        // Predicated region
        $region41: #{distribution_predictor.1} parent=39 // pred_check
          %p263 = pneg %p38
        $region42: #{distribution_predictor.1} parent=39 // pred_check_branch
          %265 = sbr.rel (%p263) target = $region44
        $region43: #{distribution_predictor.1} parent=39 // pred_region
          %s266 = sand.u32 %s28, 1
          %s267 = scalar_lea.sflag [#allocation3], %s266
          %s268 = sand.u32 %s28, 1
          %s269 = smul.addr %s268, 16
          %s270 = scalar_lea.vmem [#allocation2], %s269
          %s271 = smul.u32 2, %s18
          %s273 = ssub.s32 256, 256
          %274 = vsyncadd %s267, %s273
          %s275 = smul.addr %s271, 128
          %s276 = scalar_lea.hbm %s0, %s275
          %s277 = sshll.u32 %s270, 4
          %s278 = int_to_ptr.vmem [resolvable:$true] %s277
          %283 = dma.hbm_to_vmem [thread:$0]  %s276, 256, %s278, %s267, 128, 128, 8
        $region44: #{distribution_predictor.1} parent=39 // pred_fallthru
          _
      $region40: #{distribution_predictor.1} parent=5 // pred_fallthru
        _
      %p284 = scmp.le.s32.totalorder 1, %s18
      %p285 = scmp.lt.s32.totalorder %s18, 3
      %p286 = pnand %p284, %p285
      %p287 = pneg %p286
      // Predicated region
      $region45: #{distribution_predictor.1} parent=5 // pred_check
        _
      $region46: #{distribution_predictor.1} parent=5 // pred_check_branch
        %289 = sbr.rel (%p286) target = $region48
      $region47: #{distribution_predictor.1} parent=5 // pred_region
        %s290 = ssub.s32 %s18, 1
        %s291 = sand.u32 %s31, 1
        %s292 = scalar_lea.sflag [#allocation3], %s291
        %s293 = sand.u32 %s31, 1
        %s294 = smul.addr %s293, 16
        %s295 = scalar_lea.vmem [#allocation2], %s294
        // Predicated region
        $region49: #{distribution_predictor.1} parent=47 // pred_check
          %p296 = pneg %p44
        $region50: #{distribution_predictor.1} parent=47 // pred_check_branch
          %298 = sbr.rel (%p296) target = $region52
        $region51: #{distribution_predictor.1} parent=47 // pred_region
          %299 = dma.done %s292, 256
        $region52: #{distribution_predictor.1} parent=47 // pred_fallthru
          _
        // Predicated region
        $region53: #{distribution_predictor.1} parent=47 // pred_check
          %p300 = pneg %p65
        $region54: #{distribution_predictor.1} parent=47 // pred_check_branch
          %302 = sbr.rel (%p300) target = $region56
        $region55: #{distribution_predictor.1} parent=47 // pred_region
          %303 = dma.done [#allocation5], 512
        $region56: #{distribution_predictor.1} parent=47 // pred_fallthru
          _
        // Predicated region
        $region57: #{distribution_predictor.1} parent=47 // pred_check
          %p304 = pneg %p107
        $region58: #{distribution_predictor.1} parent=47 // pred_check_branch
          %306 = sbr.rel (%p304) target = $region60
        $region59: #{distribution_predictor.1} parent=47 // pred_region
          %307 = dma.done [#allocation5], 4096
        $region60: #{distribution_predictor.1} parent=47 // pred_fallthru
          _
        // Predicated region
        $region61: #{distribution_predictor.1} parent=47 // pred_check
          %p308 = pneg %p149
        $region62: #{distribution_predictor.1} parent=47 // pred_check_branch
          %310 = sbr.rel (%p308) target = $region64
        $region63: #{distribution_predictor.1} parent=47 // pred_region
          %311 = dma.done [#allocation8], 2048
        $region64: #{distribution_predictor.1} parent=47 // pred_fallthru
          _
        %s312 = sand.u32 %s31, 1
        %s313 = scalar_lea.sflag [#allocation3], %s312
        %s314 = sand.u32 %s31, 1
        %s315 = smul.addr %s314, 16
        %s316 = scalar_lea.vmem [#allocation2], %s315
        %p317 = pneg %p44
        %p318 = pneg %p41
        %p319 = pneg %p65
        %p320 = pneg %p62
        %p321 = pneg %p86
        %p322 = pneg %p83
        %p323 = pneg %p107
        %p324 = pneg %p104
        %p325 = pneg %p128
        %p326 = pneg %p125
        %p327 = pneg %p149
        %p328 = pneg %p146
        %p329 = pneg %p170
        %p330 = pneg %p167
        %p331 = pneg %p196
        %p332 = pneg %p193
        %s333 = smul.u32 2, %s23
        %p334 = scmp.lt.s32.totalorder %s333, 3
        %s335 = scalar_select %p334, %s333, 3
        %s336 = smul.addr %s335, 8
        %s337 = scalar_lea.vmem %s7, %s336
        %s338 = smul.u32 2, %s23
        %s339 = smul.u32 2, %s23
        %p340 = scmp.lt.s32.totalorder %s339, 3
        %s341 = scalar_select %p340, %s339, 3
        %s342 = smul.addr %s341, 8
        %s343 = scalar_lea.vmem %s7, %s342
        %s344 = smul.u32 2, %s23
        %v346 = vld [vmem:[%s295] sm:$0xff]
        %v347 = vld [vmem:[%s295 + $0x8] sm:$0xff]
        %v348 = vpack.c.bf16 %v347, %v346
        %v349 = vld [vmem:[#allocation4] sm:$0xff]
        %v350 = vld [vmem:[#allocation4 + $0x8] sm:$0xff]
        %v351 = vld [vmem:[#allocation4 + $0x10] sm:$0xff]
        %v352 = vld [vmem:[#allocation4 + $0x18] sm:$0xff]
        %v353 = vld [vmem:[%s2] sm:$0x3]
        %v355 = vlaneseq
        %v356 = vshrl.u32 %v355, 7
        %v357 = vsub.s32 0, %v356
        %v358 = vrot.slane %v353, %v357
        %v359 = vlaneseq
        %v360 = vshrl.u32 %v359, 7
        %v361 = vsub.s32 1, %v360
        %v362 = vrot.slane %v353, %v361
        %v369 = vunpack.c.l.b16 %v349
        %v370 = vunpack.c.h.b16 %v349
        %v371 = vunpack.c.l.b16 %v350
        %v372 = vunpack.c.h.b16 %v350
        %v373 = vunpack.c.l.b16 %v351
        %v374 = vunpack.c.h.b16 %v351
        %v375 = vunpack.c.l.b16 %v352
        %v376 = vunpack.c.h.b16 %v352
        %v377 = vpack.c.b16 %v371, %v369
        %v378 = vpack.c.b16 %v372, %v370
        %v379 = vpack.c.b16 %v375, %v373
        %v380 = vpack.c.b16 %v376, %v374
        %vm385 = vcmask 261120
        %v387 = vsel %vm385, %v348, 0
        %389 = vmatprep.subr.bf16.mxu0 %v378
        %390 = vmatpush1.bf16.msra.mxu0 %v377
        %391 = vmatprep.subr.bf16.mxu0 %v380
        %392 = vmatpush1.bf16.msra.mxu0 %v379
        %393 = vmatprep.subr.bf16.mxu0 0
        %394 = vmatpush1.bf16.msra.mxu0 0
        %395 = vmatprep.subr.bf16.mxu0 0
        %396 = vmatpush1.bf16.msra.mxu0 0
        %397 = vmatprep.subr.bf16.mxu0 0
        %398 = vmatpush1.bf16.msra.mxu0 0
        %399 = vmatprep.subr.bf16.mxu0 0
        %400 = vmatpush1.bf16.msra.mxu0 0
        %401 = vmatprep.subr.bf16.mxu0 0
        %402 = vmatpush1.bf16.msra.mxu0 0
        %403 = vmatprep.subr.bf16.mxu0 0
        %404 = vmatpush1.bf16.msra.mxu0 0
        %405 = vmatprep.subr.bf16.mxu0 0
        %406 = vmatpush1.bf16.msra.mxu0 0
        %407 = vmatprep.subr.bf16.mxu0 0
        %408 = vmatpush1.bf16.msra.mxu0 0
        %409 = vmatprep.subr.bf16.mxu0 0
        %410 = vmatpush1.bf16.msra.mxu0 0
        %411 = vmatprep.subr.bf16.mxu0 0
        %412 = vmatpush1.bf16.msra.mxu0 0
        %413 = vmatprep.subr.bf16.mxu0 0
        %414 = vmatpush1.bf16.msra.mxu0 0
        %415 = vmatprep.subr.bf16.mxu0 0
        %416 = vmatpush1.bf16.msra.mxu0 0
        %417 = vmatprep.subr.bf16.mxu0 0
        %418 = vmatpush1.bf16.msra.mxu0 0
        %419 = vmatprep.subr.bf16.mxu0 0
        %420 = vmatpush1.bf16.msra.mxu0 0
        %421 = vmatprep.mubr.bf16.mxu0 0
        %422 = vmatmul.mubr.bf16.gmra.mrb[0].mxu0 %v387
        %v423 = vpop.f32.mrb[0].mxu0
        %v424 = vadd.f32 %v358, %v423
        %v425 = vpop.f32.mrb[0].mxu0
        %v426 = vadd.f32 %v362, %v425
        %v427 = vpop.f32.mrb[0].mxu0
        %v428 = vadd.f32 %v358, %v427
        %v429 = vpop.f32.mrb[0].mxu0
        %v430 = vadd.f32 %v362, %v429
        %431 = vdwg.mxu0
        %v432 = vmax.f32 %v424, 0.0
        %v433 = vmax.f32 %v426, 0.0
        %v434 = vmax.f32 %v428, 0.0
        %v435 = vmax.f32 %v430, 0.0
        %v436 = vpack.c.bf16 %v434, %v432
        %v437 = vpack.c.bf16 %v435, %v433
        %v438 = vld [vmem:[#allocation6] sm:$0xff]
        %v439 = vld [vmem:[#allocation6 + $0x8] sm:$0xff]
        %v440 = vld [vmem:[#allocation6 + $0x10] sm:$0xff]
        %v441 = vld [vmem:[#allocation6 + $0x18] sm:$0xff]
        %v442 = vld [vmem:[#allocation6 + $0x20] sm:$0xff]
        %v443 = vld [vmem:[#allocation6 + $0x28] sm:$0xff]
        %v444 = vld [vmem:[#allocation6 + $0x30] sm:$0xff]
        %v445 = vld [vmem:[#allocation6 + $0x38] sm:$0xff]
        %v446 = vld [vmem:[#allocation6 + $0x40] sm:$0xff]
        %v447 = vld [vmem:[#allocation6 + $0x48] sm:$0xff]
        %v448 = vld [vmem:[#allocation6 + $0x50] sm:$0xff]
        %v449 = vld [vmem:[#allocation6 + $0x58] sm:$0xff]
        %v450 = vld [vmem:[#allocation6 + $0x60] sm:$0xff]
        %v451 = vld [vmem:[#allocation6 + $0x68] sm:$0xff]
        %v452 = vld [vmem:[#allocation6 + $0x70] sm:$0xff]
        %v453 = vld [vmem:[#allocation6 + $0x78] sm:$0xff]
        %v454 = vld [vmem:[#allocation6 + $0x80] sm:$0xff]
        %v455 = vld [vmem:[#allocation6 + $0x88] sm:$0xff]
        %v456 = vld [vmem:[#allocation6 + $0x90] sm:$0xff]
        %v457 = vld [vmem:[#allocation6 + $0x98] sm:$0xff]
        %v458 = vld [vmem:[#allocation6 + $0xa0] sm:$0xff]
        %v459 = vld [vmem:[#allocation6 + $0xa8] sm:$0xff]
        %v460 = vld [vmem:[#allocation6 + $0xb0] sm:$0xff]
        %v461 = vld [vmem:[#allocation6 + $0xb8] sm:$0xff]
        %v462 = vld [vmem:[#allocation6 + $0xc0] sm:$0xff]
        %v463 = vld [vmem:[#allocation6 + $0xc8] sm:$0xff]
        %v464 = vld [vmem:[#allocation6 + $0xd0] sm:$0xff]
        %v465 = vld [vmem:[#allocation6 + $0xd8] sm:$0xff]
        %v466 = vld [vmem:[#allocation6 + $0xe0] sm:$0xff]
        %v467 = vld [vmem:[#allocation6 + $0xe8] sm:$0xff]
        %v468 = vld [vmem:[#allocation6 + $0xf0] sm:$0xff]
        %v469 = vld [vmem:[#allocation6 + $0xf8] sm:$0xff]
        %v470 = vld [vmem:[%s4] sm:$0x3]
        %v472 = vlaneseq
        %v473 = vshrl.u32 %v472, 7
        %v474 = vsub.s32 0, %v473
        %v475 = vrot.slane %v470, %v474
        %v476 = vlaneseq
        %v477 = vshrl.u32 %v476, 7
        %v478 = vsub.s32 1, %v477
        %v479 = vrot.slane %v470, %v478
        %v514 = vunpack.c.l.b16 %v438
        %v515 = vunpack.c.h.b16 %v438
        %v516 = vunpack.c.l.b16 %v439
        %v517 = vunpack.c.h.b16 %v439
        %v518 = vunpack.c.l.b16 %v440
        %v519 = vunpack.c.h.b16 %v440
        %v520 = vunpack.c.l.b16 %v441
        %v521 = vunpack.c.h.b16 %v441
        %v522 = vunpack.c.l.b16 %v442
        %v523 = vunpack.c.h.b16 %v442
        %v524 = vunpack.c.l.b16 %v443
        %v525 = vunpack.c.h.b16 %v443
        %v526 = vunpack.c.l.b16 %v444
        %v527 = vunpack.c.h.b16 %v444
        %v528 = vunpack.c.l.b16 %v445
        %v529 = vunpack.c.h.b16 %v445
        %v530 = vunpack.c.l.b16 %v446
        %v531 = vunpack.c.h.b16 %v446
        %v532 = vunpack.c.l.b16 %v447
        %v533 = vunpack.c.h.b16 %v447
        %v534 = vunpack.c.l.b16 %v448
        %v535 = vunpack.c.h.b16 %v448
        %v536 = vunpack.c.l.b16 %v449
        %v537 = vunpack.c.h.b16 %v449
        %v538 = vunpack.c.l.b16 %v450
        %v539 = vunpack.c.h.b16 %v450
        %v540 = vunpack.c.l.b16 %v451
        %v541 = vunpack.c.h.b16 %v451
        %v542 = vunpack.c.l.b16 %v452
        %v543 = vunpack.c.h.b16 %v452
        %v544 = vunpack.c.l.b16 %v453
        %v545 = vunpack.c.h.b16 %v453
        %v546 = vunpack.c.l.b16 %v454
        %v547 = vunpack.c.h.b16 %v454
        %v548 = vunpack.c.l.b16 %v455
        %v549 = vunpack.c.h.b16 %v455
        %v550 = vunpack.c.l.b16 %v456
        %v551 = vunpack.c.h.b16 %v456
        %v552 = vunpack.c.l.b16 %v457
        %v553 = vunpack.c.h.b16 %v457
        %v554 = vunpack.c.l.b16 %v458
        %v555 = vunpack.c.h.b16 %v458
        %v556 = vunpack.c.l.b16 %v459
        %v557 = vunpack.c.h.b16 %v459
        %v558 = vunpack.c.l.b16 %v460
        %v559 = vunpack.c.h.b16 %v460
        %v560 = vunpack.c.l.b16 %v461
        %v561 = vunpack.c.h.b16 %v461
        %v562 = vunpack.c.l.b16 %v462
        %v563 = vunpack.c.h.b16 %v462
        %v564 = vunpack.c.l.b16 %v463
        %v565 = vunpack.c.h.b16 %v463
        %v566 = vunpack.c.l.b16 %v464
        %v567 = vunpack.c.h.b16 %v464
        %v568 = vunpack.c.l.b16 %v465
        %v569 = vunpack.c.h.b16 %v465
        %v570 = vunpack.c.l.b16 %v466
        %v571 = vunpack.c.h.b16 %v466
        %v572 = vunpack.c.l.b16 %v467
        %v573 = vunpack.c.h.b16 %v467
        %v574 = vunpack.c.l.b16 %v468
        %v575 = vunpack.c.h.b16 %v468
        %v576 = vunpack.c.l.b16 %v469
        %v577 = vunpack.c.h.b16 %v469
        %v578 = vpack.c.b16 %v516, %v514
        %v579 = vpack.c.b16 %v517, %v515
        %v580 = vpack.c.b16 %v520, %v518
        %v581 = vpack.c.b16 %v521, %v519
        %v582 = vpack.c.b16 %v524, %v522
        %v583 = vpack.c.b16 %v525, %v523
        %v584 = vpack.c.b16 %v528, %v526
        %v585 = vpack.c.b16 %v529, %v527
        %v586 = vpack.c.b16 %v532, %v530
        %v587 = vpack.c.b16 %v533, %v531
        %v588 = vpack.c.b16 %v536, %v534
        %v589 = vpack.c.b16 %v537, %v535
        %v590 = vpack.c.b16 %v540, %v538
        %v591 = vpack.c.b16 %v541, %v539
        %v592 = vpack.c.b16 %v544, %v542
        %v593 = vpack.c.b16 %v545, %v543
        %v594 = vpack.c.b16 %v548, %v546
        %v595 = vpack.c.b16 %v549, %v547
        %v596 = vpack.c.b16 %v552, %v550
        %v597 = vpack.c.b16 %v553, %v551
        %v598 = vpack.c.b16 %v556, %v554
        %v599 = vpack.c.b16 %v557, %v555
        %v600 = vpack.c.b16 %v560, %v558
        %v601 = vpack.c.b16 %v561, %v559
        %v602 = vpack.c.b16 %v564, %v562
        %v603 = vpack.c.b16 %v565, %v563
        %v604 = vpack.c.b16 %v568, %v566
        %v605 = vpack.c.b16 %v569, %v567
        %v606 = vpack.c.b16 %v572, %v570
        %v607 = vpack.c.b16 %v573, %v571
        %v608 = vpack.c.b16 %v576, %v574
        %v609 = vpack.c.b16 %v577, %v575
        %642 = vmatprep.subr.bf16.mxu0 %v579
        %643 = vmatpush1.bf16.msra.mxu0 %v578
        %644 = vmatprep.subr.bf16.mxu0 %v581
        %645 = vmatpush1.bf16.msra.mxu0 %v580
        %646 = vmatprep.subr.bf16.mxu0 %v583
        %647 = vmatpush1.bf16.msra.mxu0 %v582
        %648 = vmatprep.subr.bf16.mxu0 %v585
        %649 = vmatpush1.bf16.msra.mxu0 %v584
        %650 = vmatprep.subr.bf16.mxu0 %v587
        %651 = vmatpush1.bf16.msra.mxu0 %v586
        %652 = vmatprep.subr.bf16.mxu0 %v589
        %653 = vmatpush1.bf16.msra.mxu0 %v588
        %654 = vmatprep.subr.bf16.mxu0 %v591
        %655 = vmatpush1.bf16.msra.mxu0 %v590
        %656 = vmatprep.subr.bf16.mxu0 %v593
        %657 = vmatpush1.bf16.msra.mxu0 %v592
        %658 = vmatprep.subr.bf16.mxu0 %v595
        %659 = vmatpush1.bf16.msra.mxu0 %v594
        %660 = vmatprep.subr.bf16.mxu0 %v597
        %661 = vmatpush1.bf16.msra.mxu0 %v596
        %662 = vmatprep.subr.bf16.mxu0 %v599
        %663 = vmatpush1.bf16.msra.mxu0 %v598
        %664 = vmatprep.subr.bf16.mxu0 %v601
        %665 = vmatpush1.bf16.msra.mxu0 %v600
        %666 = vmatprep.subr.bf16.mxu0 %v603
        %667 = vmatpush1.bf16.msra.mxu0 %v602
        %668 = vmatprep.subr.bf16.mxu0 %v605
        %669 = vmatpush1.bf16.msra.mxu0 %v604
        %670 = vmatprep.subr.bf16.mxu0 %v607
        %671 = vmatpush1.bf16.msra.mxu0 %v606
        %672 = vmatprep.subr.bf16.mxu0 %v609
        %673 = vmatpush1.bf16.msra.mxu0 %v608
        %674 = vmatprep.mubr.bf16.mxu0 %v437
        %675 = vmatmul.mubr.bf16.gmra.mrb[0].mxu0 %v436
        %v676 = vpop.f32.mrb[0].mxu0
        %v677 = vadd.f32 %v475, %v676
        %v678 = vpop.f32.mrb[0].mxu0
        %v679 = vadd.f32 %v479, %v678
        %v680 = vpop.f32.mrb[0].mxu0
        %v681 = vadd.f32 %v475, %v680
        %v682 = vpop.f32.mrb[0].mxu0
        %v683 = vadd.f32 %v479, %v682
        %684 = vdwg.mxu0
        %v685 = vmax.f32 %v677, 0.0
        %v686 = vmax.f32 %v679, 0.0
        %v687 = vmax.f32 %v681, 0.0
        %v688 = vmax.f32 %v683, 0.0
        %v689 = vpack.c.bf16 %v687, %v685
        %v690 = vpack.c.bf16 %v688, %v686
        %v691 = vld [vmem:[#allocation7] sm:$0xf]
        %v692 = vld [vmem:[#allocation7 + $0x4] sm:$0xf]
        %v693 = vld [vmem:[#allocation7 + $0x8] sm:$0xf]
        %v694 = vld [vmem:[#allocation7 + $0xc] sm:$0xf]
        %v695 = vld [vmem:[#allocation7 + $0x10] sm:$0xf]
        %v696 = vld [vmem:[#allocation7 + $0x14] sm:$0xf]
        %v697 = vld [vmem:[#allocation7 + $0x18] sm:$0xf]
        %v698 = vld [vmem:[#allocation7 + $0x1c] sm:$0xf]
        %v699 = vld [vmem:[#allocation7 + $0x20] sm:$0xf]
        %v700 = vld [vmem:[#allocation7 + $0x24] sm:$0xf]
        %v701 = vld [vmem:[#allocation7 + $0x28] sm:$0xf]
        %v702 = vld [vmem:[#allocation7 + $0x2c] sm:$0xf]
        %v703 = vld [vmem:[#allocation7 + $0x30] sm:$0xf]
        %v704 = vld [vmem:[#allocation7 + $0x34] sm:$0xf]
        %v705 = vld [vmem:[#allocation7 + $0x38] sm:$0xf]
        %v706 = vld [vmem:[#allocation7 + $0x3c] sm:$0xf]
        %v707 = vld [vmem:[#allocation7 + $0x40] sm:$0xf]
        %v708 = vld [vmem:[#allocation7 + $0x44] sm:$0xf]
        %v709 = vld [vmem:[#allocation7 + $0x48] sm:$0xf]
        %v710 = vld [vmem:[#allocation7 + $0x4c] sm:$0xf]
        %v711 = vld [vmem:[#allocation7 + $0x50] sm:$0xf]
        %v712 = vld [vmem:[#allocation7 + $0x54] sm:$0xf]
        %v713 = vld [vmem:[#allocation7 + $0x58] sm:$0xf]
        %v714 = vld [vmem:[#allocation7 + $0x5c] sm:$0xf]
        %v715 = vld [vmem:[#allocation7 + $0x60] sm:$0xf]
        %v716 = vld [vmem:[#allocation7 + $0x64] sm:$0xf]
        %v717 = vld [vmem:[#allocation7 + $0x68] sm:$0xf]
        %v718 = vld [vmem:[#allocation7 + $0x6c] sm:$0xf]
        %v719 = vld [vmem:[#allocation7 + $0x70] sm:$0xf]
        %v720 = vld [vmem:[#allocation7 + $0x74] sm:$0xf]
        %v721 = vld [vmem:[#allocation7 + $0x78] sm:$0xf]
        %v722 = vld [vmem:[#allocation7 + $0x7c] sm:$0xf]
        %v723 = vld [vmem:[%s6] sm:$0x1]
        %v725 = vlaneseq
        %v726 = vshrl.u32 %v725, 7
        %v727 = vsub.s32 0, %v726
        %v728 = vrot.slane %v723, %v727
        %v762 = vunpack.c.l.b16 %v691
        %v763 = vunpack.c.l.b16 %v692
        %v764 = vunpack.c.l.b16 %v693
        %v765 = vunpack.c.l.b16 %v694
        %v766 = vunpack.c.l.b16 %v695
        %v767 = vunpack.c.l.b16 %v696
        %v768 = vunpack.c.l.b16 %v697
        %v769 = vunpack.c.l.b16 %v698
        %v770 = vunpack.c.l.b16 %v699
        %v771 = vunpack.c.l.b16 %v700
        %v772 = vunpack.c.l.b16 %v701
        %v773 = vunpack.c.l.b16 %v702
        %v774 = vunpack.c.l.b16 %v703
        %v775 = vunpack.c.l.b16 %v704
        %v776 = vunpack.c.l.b16 %v705
        %v777 = vunpack.c.l.b16 %v706
        %v778 = vunpack.c.l.b16 %v707
        %v779 = vunpack.c.l.b16 %v708
        %v780 = vunpack.c.l.b16 %v709
        %v781 = vunpack.c.l.b16 %v710
        %v782 = vunpack.c.l.b16 %v711
        %v783 = vunpack.c.l.b16 %v712
        %v784 = vunpack.c.l.b16 %v713
        %v785 = vunpack.c.l.b16 %v714
        %v786 = vunpack.c.l.b16 %v715
        %v787 = vunpack.c.l.b16 %v716
        %v788 = vunpack.c.l.b16 %v717
        %v789 = vunpack.c.l.b16 %v718
        %v790 = vunpack.c.l.b16 %v719
        %v791 = vunpack.c.l.b16 %v720
        %v792 = vunpack.c.l.b16 %v721
        %v793 = vunpack.c.l.b16 %v722
        %v794 = vpack.c.b16 %v763, %v762
        %v795 = vpack.c.b16 %v765, %v764
        %v796 = vpack.c.b16 %v767, %v766
        %v797 = vpack.c.b16 %v769, %v768
        %v798 = vpack.c.b16 %v771, %v770
        %v799 = vpack.c.b16 %v773, %v772
        %v800 = vpack.c.b16 %v775, %v774
        %v801 = vpack.c.b16 %v777, %v776
        %v802 = vpack.c.b16 %v779, %v778
        %v803 = vpack.c.b16 %v781, %v780
        %v804 = vpack.c.b16 %v783, %v782
        %v805 = vpack.c.b16 %v785, %v784
        %v806 = vpack.c.b16 %v787, %v786
        %v807 = vpack.c.b16 %v789, %v788
        %v808 = vpack.c.b16 %v791, %v790
        %v809 = vpack.c.b16 %v793, %v792
        %826 = vmatprep.subr.bf16.mxu0 0
        %827 = vmatpush1.bf16.msra.mxu0 %v794
        %828 = vmatprep.subr.bf16.mxu0 0
        %829 = vmatpush1.bf16.msra.mxu0 %v795
        %830 = vmatprep.subr.bf16.mxu0 0
        %831 = vmatpush1.bf16.msra.mxu0 %v796
        %832 = vmatprep.subr.bf16.mxu0 0
        %833 = vmatpush1.bf16.msra.mxu0 %v797
        %834 = vmatprep.subr.bf16.mxu0 0
        %835 = vmatpush1.bf16.msra.mxu0 %v798
        %836 = vmatprep.subr.bf16.mxu0 0
        %837 = vmatpush1.bf16.msra.mxu0 %v799
        %838 = vmatprep.subr.bf16.mxu0 0
        %839 = vmatpush1.bf16.msra.mxu0 %v800
        %840 = vmatprep.subr.bf16.mxu0 0
        %841 = vmatpush1.bf16.msra.mxu0 %v801
        %842 = vmatprep.subr.bf16.mxu0 0
        %843 = vmatpush1.bf16.msra.mxu0 %v802
        %844 = vmatprep.subr.bf16.mxu0 0
        %845 = vmatpush1.bf16.msra.mxu0 %v803
        %846 = vmatprep.subr.bf16.mxu0 0
        %847 = vmatpush1.bf16.msra.mxu0 %v804
        %848 = vmatprep.subr.bf16.mxu0 0
        %849 = vmatpush1.bf16.msra.mxu0 %v805
        %850 = vmatprep.subr.bf16.mxu0 0
        %851 = vmatpush1.bf16.msra.mxu0 %v806
        %852 = vmatprep.subr.bf16.mxu0 0
        %853 = vmatpush1.bf16.msra.mxu0 %v807
        %854 = vmatprep.subr.bf16.mxu0 0
        %855 = vmatpush1.bf16.msra.mxu0 %v808
        %856 = vmatprep.subr.bf16.mxu0 0
        %857 = vmatpush1.bf16.msra.mxu0 %v809
        %858 = vmatprep.mubr.bf16.mxu0 %v690
        %859 = vmatmul.mubr.bf16.gmra.mrb[0].mxu0 %v689
        %v860 = vpop.f32.mrb[0].mxu0
        %v861 = vadd.f32 %v728, %v860
        %v862 = vpop.f32.mrb[0].mxu0
        %v863 = vpop.f32.mrb[0].mxu0
        %v864 = vadd.f32 %v728, %v863
        %v865 = vpop.f32.mrb[0].mxu0
        %866 = vdwg.mxu0
        %867 = vmax.xlane.f32.xlu0 %v861
        %v868 = vpop.xlane.xlu0 %867
        %869 = vmax.xlane.f32.xlu0 %v864
        %v870 = vpop.xlane.xlu0 %869
        %v871 = vsub.f32 %v861, %v868
        %v872 = vsub.f32 %v864, %v870
        %v873 = vmul.f32 %v871, 1.442695
        %v874 = vpow.pop %v873
        %v875 = vmul.f32 %v872, 1.442695
        %v876 = vpow.pop %v875
        %877 = vadd.xlane.f32.xlu0 %v874
        %v878 = vpop.xlane.xlu0 %877
        %879 = vadd.xlane.f32.xlu0 %v876
        %v880 = vpop.xlane.xlu0 %879
        %v881 = vlog2.pop %v878
        %v882 = vmul.f32 %v881, 0.6931472
        %v883 = vlog2.pop %v880
        %v884 = vmul.f32 %v883, 0.6931472
        %v885 = vsub.f32 %v871, %v882
        %v886 = vsub.f32 %v872, %v884
        %vm887 = vcmask 130048
        %888 = vst.msk [vmem:[%s343] sm:$0xff] %vm887, %v885
        %889 = vst.msk [vmem:[%s343 + $0x8] sm:$0xff] %vm887, %v886
        %s890 = smul.u32 2, %s23
        %p891 = scmp.lt.s32.totalorder %s890, 3
        %s892 = scalar_select %p891, %s890, 3
        %s893 = smul.addr %s892, 8
        %s894 = scalar_lea.vmem %s7, %s893
        // Predicated region
        $region65: #{distribution_predictor.1} parent=47 // pred_check
          %p895 = pneg %p193
        $region66: #{distribution_predictor.1} parent=47 // pred_check_branch
          %897 = sbr.rel (%p895) target = $region68
        $region67: #{distribution_predictor.1} parent=47 // pred_region
          %s898 = smul.u32 2, %s23
        $region68: #{distribution_predictor.1} parent=47 // pred_fallthru
          _
      $region48: #{distribution_predictor.1} parent=5 // pred_fallthru
        _
      %p899 = scmp.le.s32.totalorder 2, %s18
      // Predicated region
      $region69: #{distribution_predictor.1} parent=5 // pred_check
        %p900 = pneg %p899
      $region70: #{distribution_predictor.1} parent=5 // pred_check_branch
        %902 = sbr.rel (%p900) target = $region72
      $region71: #{distribution_predictor.1} parent=5 // pred_region
        %s903 = ssub.s32 %s18, 2
        // Predicated region
        $region73: #{distribution_predictor.1} parent=71 // pred_check
          %p904 = pneg %p199
        $region74: #{distribution_predictor.1} parent=71 // pred_check_branch
          %906 = sbr.rel (%p904) target = $region76
        $region75: #{distribution_predictor.1} parent=71 // pred_region
          %s907 = smul.u32 2, %s24
          %p908 = scmp.lt.s32.totalorder %s907, 3
          %s909 = scalar_select %p908, %s907, 3
          %s910 = smul.addr %s909, 8
          %s911 = scalar_lea.vmem %s7, %s910
        $region76: #{distribution_predictor.1} parent=71 // pred_fallthru
          _
      $region72: #{distribution_predictor.1} parent=5 // pred_fallthru
        _
    $region6: #{distribution_predictor.1} parent=1 // loop_footer
      %s22 = sadd.s32 1, %s18
    $region7: #{distribution_predictor.1} parent=1 // loop_footer_branch
      %17 = sbr.rel target = $region3
    $region8: #{distribution_predictor.1} parent=1 // loop_exit
      _
    %912 = vsyncpa [#allocation3], 1
    %s913 = scalar_lea.sflag [#allocation3], 1
    %914 = vsyncpa %s913, 1
    %915 = vsyncpa [#allocation5], 1
    %916 = vsyncpa [#allocation8], 1

</llo_original>
